<compile_context>
chip_gen: v7x
topology: tpu7x:2x2x1
jax: 0.10.0
libtpu: 0.0.40
codegen_flags: <defaults>
</compile_context>

<pallas_src>
import functools
import math

import jax
import jax.numpy as jnp
from jax import lax
from jax.experimental import pallas as pl
from jax.experimental.pallas import tpu as pltpu

_INV_SQRT2 = 1.0 / math.sqrt(2.0)


def _round_up(x, m):
    return ((x + m - 1) // m) * m


def _gelu(h, approximate):
    if approximate:
        # tanh approximation: transcendental lands on the EUP slot (v5e has no
        # erf; the exact erf polynomial otherwise runs on the VALU).
        return jax.nn.gelu(h, approximate=True)
    # Exact GELU (PyTorch nn.GELU default): 0.5*x*(1+erf(x/sqrt(2))).
    return 0.5 * h * (1.0 + lax.erf(h * _INV_SQRT2))


# ----------------------------------------------------------------------------
# Kernels
# ----------------------------------------------------------------------------
def _ffn_resident_kernel(x_ref, w1_ref, b1_ref, w2_ref, b2_ref, o_ref, *,
                         approximate_gelu):
    # x_ref: (tm, Hp) compute dtype; w*: (Hp, Hp) compute dtype; b*: (1, Hp) f32.
    # TODO(synk): dropout is identity here (inference); training-time dropout
    # would use pltpu.prng_seed / pltpu.stateful_bernoulli.
    x = x_ref[...]
    h = jnp.dot(x, w1_ref[...], preferred_element_type=jnp.float32) + b1_ref[...]
    h = _gelu(h, approximate_gelu)
    y = jnp.dot(h.astype(w2_ref.dtype), w2_ref[...],
                preferred_element_type=jnp.float32) + b2_ref[...]
    o_ref[...] = y.astype(o_ref.dtype)


def _ffn_tiled_kernel(x_ref, w1_ref, b1_ref, w2_ref, b2_ref, o_ref, acc_ref, *,
                      approximate_gelu):
    # Streams the hidden (intermediate) dim in tn-wide chunks:
    #   acc += gelu(x @ W1[:, chunk] + b1[chunk]) @ W2[chunk, :]
    # which bounds the live f32 intermediate to (tm, tn).
    n = pl.program_id(1)

    @pl.when(n == 0)
    def _():
        acc_ref[...] = jnp.zeros_like(acc_ref)

    h = jnp.dot(x_ref[...], w1_ref[...],
                preferred_element_type=jnp.float32) + b1_ref[...]
    h = _gelu(h, approximate_gelu)
    acc_ref[...] += jnp.dot(h.astype(w2_ref.dtype), w2_ref[...],
                            preferred_element_type=jnp.float32)

    @pl.when(n == pl.num_programs(1) - 1)
    def _():
        o_ref[...] = (acc_ref[...] + b2_ref[...]).astype(o_ref.dtype)


# ----------------------------------------------------------------------------
# Hardware / feature probes (one-time, cached -> deterministic footprint)
# ----------------------------------------------------------------------------
@functools.lru_cache(maxsize=None)
def _vmem_capacity_bytes():
    try:
        return int(pltpu.get_tpu_info().vmem_capacity_bytes)
    except Exception:
        return 64 * 1024 * 1024  # conservative: v7x per-TensorCore VMEM


@functools.lru_cache(maxsize=None)
def _single_buffer_weights_ok():
    """One-time probe: can constant-index weight blocks use pl.Buffered(1)?"""
    if not hasattr(pl, "Buffered"):
        return False
    try:
        def k(x_ref, w_ref, o_ref):
            o_ref[...] = jnp.dot(x_ref[...], w_ref[...],
                                 preferred_element_type=jnp.float32)

        f = pl.pallas_call(
            k,
            out_shape=jax.ShapeDtypeStruct((16, 128), jnp.float32),
            grid_spec=pltpu.PrefetchScalarGridSpec(
                num_scalar_prefetch=0,
                grid=(2,),
                in_specs=[
                    pl.BlockSpec((8, 128), lambda i: (i, 0)),
                    pl.BlockSpec((128, 128), lambda i: (0, 0),
                                 pipeline_mode=pl.Buffered(1)),
                ],
                out_specs=pl.BlockSpec((8, 128), lambda i: (i, 0)),
            ),
        )
        jax.block_until_ready(f(jnp.zeros((16, 128), jnp.float32),
                                jnp.zeros((128, 128), jnp.float32)))
        return True
    except Exception:
        return False


# ----------------------------------------------------------------------------
# Parameter preparation (done ONCE, cached by the caller)
# ----------------------------------------------------------------------------
def prepare_ffn_params(w1, b1, w2, b2, *, compute_dtype=jnp.bfloat16,
                       lane_multiple=128):
    """Pad + transpose + cast nn.Linear params once so the kernel is the only
    per-call weight reader.

    w1, w2: (H, H) in nn.Linear (out, in) layout; b1, b2: (H,).
    Zero padding is numerically inert (padded K/N contribute 0; padded output
    lanes are sliced off).
    """
    # TODO(synk): on v6e/v7x pass lane_multiple=256 when H is an odd multiple
    # of 128 so the 256-wide MXU is fully filled in K/N.
    H = w1.shape[0]
    Hp = _round_up(H, lane_multiple)
    pad2 = ((0, Hp - H), (0, Hp - H))
    pad1 = ((0, 0), (0, Hp - H))
    return {
        "w1": jnp.pad(jnp.asarray(w1).T, pad2).astype(compute_dtype),  # (in,out)
        "b1": jnp.pad(jnp.asarray(b1).reshape(1, H), pad1).astype(jnp.float32),
        "w2": jnp.pad(jnp.asarray(w2).T, pad2).astype(compute_dtype),
        "b2": jnp.pad(jnp.asarray(b2).reshape(1, H), pad1).astype(jnp.float32),
        "H": H,
        "Hp": Hp,
        "compute_dtype": jnp.dtype(compute_dtype),
    }


# ----------------------------------------------------------------------------
# Forward
# ----------------------------------------------------------------------------
def ffn_forward(particles, prep, *, tm=512, out_dtype=None,
                approximate_gelu=False, force_path=None, tn=None):
    """particles: (B, P, H). Returns (B, P, H) in out_dtype (default: input dtype)."""
    B, P, H = particles.shape
    if H != prep["H"]:
        raise ValueError(f"hidden size mismatch: particles H={H}, prep H={prep['H']}")
    Hp = int(prep["Hp"])
    cdt = prep["compute_dtype"]
    out_dtype = jnp.dtype(particles.dtype if out_dtype is None else out_dtype)
    cbytes = cdt.itemsize
    obytes = out_dtype.itemsize
    M = B * P

    x = particles.reshape(M, H).astype(cdt)
    if Hp != H:
        # Lane padding only (conditional). The M tail is handled by the cdiv row
        # grid + masked tail tile -- rows are never padded or copied.
        x = jnp.pad(x, ((0, 0), (0, Hp - H)))

    # Row tiling: near-equal multiples of 8, capped at `tm`; force >= 2 tiles
    # for medium M so the "parallel" axis spans v7x's two TensorCores.
    n_rows = pl.cdiv(M, tm)
    if n_rows == 1 and M >= 256:
        n_rows = 2
    tm_eff = max(8, _round_up(pl.cdiv(M, n_rows), 8))
    n_rows = pl.cdiv(M, tm_eff)

    cap = _vmem_capacity_bytes()
    single_buf = _single_buffer_weights_ok()
    wbuf = 1 if single_buf else 2

    def resident_need(tm_):
        return (2 * tm_ * Hp * (cbytes + obytes)                   # dbl-buffered x / out tiles
                + wbuf * (2 * Hp * Hp * cbytes + 2 * 8 * Hp * 4)   # resident weights + biases
                + tm_ * Hp * (4 + cbytes))                         # f32 h + its cast

    def tiled_need(tm_, tn_):
        return (2 * tm_ * Hp * (cbytes + obytes)
                + tm_ * Hp * 4                                     # f32 accumulator
                + 2 * 2 * Hp * tn_ * cbytes                        # dbl-buffered W1/W2 blocks
                + 2 * 8 * (tn_ + Hp) * 4                           # biases (sublane padded)
                + tm_ * tn_ * (4 + cbytes))                        # f32 h chunk + cast

    if force_path not in (None, "resident", "tiled"):
        raise ValueError(f"unknown force_path: {force_path}")
    use_tiled = (force_path == "tiled"
                 or (force_path is None
                     and resident_need(tm_eff) * 1.4 > 0.80 * cap))

    cost = pl.CostEstimate(
        flops=4 * M * Hp * Hp,                 # two (M,Hp)x(Hp,Hp) matmuls
        transcendentals=M * Hp,                # one GELU transcendental / element
        bytes_accessed=(M * Hp * (cbytes + obytes)
                        + 2 * Hp * Hp * cbytes + 2 * Hp * 4),
    )
    kernel_kwargs = dict(approximate_gelu=approximate_gelu)
    args = (x, prep["w1"], prep["b1"], prep["w2"], prep["b2"])

    if not use_tiled:
        need = resident_need(tm_eff)
        vmem_limit = int(min(max(need * 1.5, 32 << 20), 0.87 * cap))

        if single_buf:
            def wspec(shape):
                return pl.BlockSpec(shape, lambda i: (0, 0),
                                    pipeline_mode=pl.Buffered(1))
        else:
            def wspec(shape):
                return pl.BlockSpec(shape, lambda i: (0, 0))

        y = pl.pallas_call(
            functools.partial(_ffn_resident_kernel, **kernel_kwargs),
            out_shape=jax.ShapeDtypeStruct((M, Hp), out_dtype),
            grid_spec=pltpu.PrefetchScalarGridSpec(
                num_scalar_prefetch=0,
                grid=(n_rows,),
                in_specs=[
                    pl.BlockSpec((tm_eff, Hp), lambda i: (i, 0)),  # activation rows
                    wspec((Hp, Hp)),                               # W1^T (resident)
                    wspec((1, Hp)),                                # b1
                    wspec((Hp, Hp)),                               # W2^T (resident)
                    wspec((1, Hp)),                                # b2
                ],
                out_specs=pl.BlockSpec((tm_eff, Hp), lambda i: (i, 0)),
            ),
            compiler_params=pltpu.CompilerParams(
                dimension_semantics=("parallel",),
                vmem_limit_bytes=vmem_limit,
            ),
            cost_estimate=cost,
        )(*args)
    else:
        # Weight-streaming path: second grid axis over the hidden dim.
        if tn is None:
            tn = next(d for d in (512, 256, 128) if Hp % d == 0)
        if Hp % tn != 0 or tn % 128 != 0:
            raise ValueError(f"tn={tn} must be a multiple of 128 dividing Hp={Hp}")
        while tiled_need(tm_eff, tn) * 1.4 > 0.85 * cap and tm_eff > 64:
            tm_eff = max(64, _round_up(tm_eff // 2, 8))
        n_rows = pl.cdiv(M, tm_eff)
        n_cols = Hp // tn
        need = tiled_need(tm_eff, tn)
        vmem_limit = int(min(max(need * 1.5, 32 << 20), 0.87 * cap))

        y = pl.pallas_call(
            functools.partial(_ffn_tiled_kernel, **kernel_kwargs),
            out_shape=jax.ShapeDtypeStruct((M, Hp), out_dtype),
            grid_spec=pltpu.PrefetchScalarGridSpec(
                num_scalar_prefetch=0,
                grid=(n_rows, n_cols),
                in_specs=[
                    pl.BlockSpec((tm_eff, Hp), lambda i, n: (i, 0)),  # activations
                    pl.BlockSpec((Hp, tn), lambda i, n: (0, n)),      # W1^T column block
                    pl.BlockSpec((1, tn), lambda i, n: (0, n)),       # b1 chunk
                    pl.BlockSpec((tn, Hp), lambda i, n: (n, 0)),      # W2^T row block
                    pl.BlockSpec((1, Hp), lambda i, n: (0, 0)),       # b2
                ],
                out_specs=pl.BlockSpec((tm_eff, Hp), lambda i, n: (i, 0)),
                scratch_shapes=[pltpu.VMEM((tm_eff, Hp), jnp.float32)],
            ),
            compiler_params=pltpu.CompilerParams(
                dimension_semantics=("parallel", "arbitrary"),
                vmem_limit_bytes=vmem_limit,
            ),
            cost_estimate=cost,
        )(*args)

    if Hp != H:
        y = y[:, :H]
    return y.reshape(B, P, H)


# ----------------------------------------------------------------------------
# Reference / test harness
# ----------------------------------------------------------------------------
def init_params(key, hidden_size):
    """nn.Linear-style params: W (out, in), b (out,)."""
    k1, k2, k3, k4 = jax.random.split(key, 4)
    bound = 1.0 / math.sqrt(hidden_size)
    return {
        "w1": jax.random.uniform(k1, (hidden_size, hidden_size), jnp.float32, -bound, bound),
        "b1": jax.random.uniform(k2, (hidden_size,), jnp.float32, -bound, bound),
        "w2": jax.random.uniform(k3, (hidden_size, hidden_size), jnp.float32, -bound, bound),
        "b2": jax.random.uniform(k4, (hidden_size,), jnp.float32, -bound, bound),
    }


def ffn_reference(particles, params):
    """Pure-JAX f32 reference matching the PyTorch forward (dropout = identity)."""
    h = jnp.einsum("bph,oh->bpo", particles, params["w1"]) + params["b1"]
    h = 0.5 * h * (1.0 + lax.erf(h * _INV_SQRT2))
    return jnp.einsum("bph,oh->bpo", h, params["w2"]) + params["b2"]


if __name__ == "__main__":
    # Shapes implied by the module: particles [batch, n_particles, hidden].
    B, P, H = 2, 8, 32
    key = jax.random.PRNGKey(0)
    kx, kp = jax.random.split(key)
    particles = jax.random.normal(kx, (B, P, H), jnp.float32)
    params = init_params(kp, H)
    ref = ffn_reference(particles, params)

    # Production path: weights pre-padded/cast to bf16 ONCE, resident-weight kernel.
    prep_bf16 = prepare_ffn_params(params["w1"], params["b1"],
                                   params["w2"], params["b2"],
                                   compute_dtype=jnp.bfloat16)
    out = jax.block_until_ready(ffn_forward(particles, prep_bf16))
    assert out.shape == (B, P, H) and out.dtype == particles.dtype
    err = float(jnp.max(jnp.abs(out - ref)))
    assert jnp.allclose(out, ref, atol=5e-2, rtol=5e-2), f"bf16 max err {err}"

    # Test-only f32-operand path for a tight numerical check vs. the reference.
    prep_f32 = prepare_ffn_params(params["w1"], params["b1"],
                                  params["w2"], params["b2"],
                                  compute_dtype=jnp.float32)
    out_f32 = jax.block_until_ready(
        ffn_forward(particles, prep_f32, force_path="resident"))
    err32 = float(jnp.max(jnp.abs(out_f32 - ref)))
    assert jnp.allclose(out_f32, ref, atol=1e-5, rtol=1e-5), f"f32 max err {err32}"

    # Exercise the weight-streaming (hidden-dim tiled) path: >1 column step and
    # a ragged row count (M = 33) so the masked tail tile is covered too.
    B2, P2, H2 = 3, 11, 256
    kx2, kp2 = jax.random.split(jax.random.PRNGKey(1))
    particles2 = jax.random.normal(kx2, (B2, P2, H2), jnp.float32)
    params2 = init_params(kp2, H2)
    ref2 = ffn_reference(particles2, params2)
    prep2 = prepare_ffn_params(params2["w1"], params2["b1"],
                               params2["w2"], params2["b2"],
                               compute_dtype=jnp.float32)
    out2 = jax.block_until_ready(
        ffn_forward(particles2, prep2, force_path="tiled", tn=128))
    err2 = float(jnp.max(jnp.abs(out2 - ref2)))
    assert out2.shape == (B2, P2, H2)
    assert jnp.allclose(out2, ref2, atol=1e-3, rtol=1e-3), f"tiled max err {err2}"

    print("KERNEL_OK")
</pallas_src>

<mosaic_0001>
module attributes {stable_mosaic.version = 11 : i64} {
  func.func @k(%arg0: i32, %arg1: memref<8x128xf32, #tpu.memory_space<vmem>>, %arg2: memref<128x128xf32, #tpu.memory_space<vmem>>, %arg3: memref<8x128xf32, #tpu.memory_space<vmem>>) attributes {dimension_semantics = [#tpu.dimension_semantics<arbitrary>], iteration_bounds = array<i64: 2>, scalar_prefetch = 0 : i64, scratch_operands = 0 : i64, tpu.core_type = #tpu.core_type<tc>, window_params = [{transform_indices = @transform_0, window_bounds = array<i64: 8, 128>}, {pipeline_mode = #tpu.pipeline_mode<synchronous>, transform_indices = @transform_1, window_bounds = array<i64: 128, 128>}, {transform_indices = @transform_2, window_bounds = array<i64: 8, 128>}]} {
    %c0 = arith.constant 0 : index
    %c0_0 = arith.constant 0 : index
    %0 = vector.load %arg1[%c0, %c0_0] : memref<8x128xf32, #tpu.memory_space<vmem>>, vector<8x128xf32>
    %c0_1 = arith.constant 0 : index
    %c0_2 = arith.constant 0 : index
    %1 = vector.load %arg2[%c0_1, %c0_2] : memref<128x128xf32, #tpu.memory_space<vmem>>, vector<128x128xf32>
    %cst = arith.constant dense<0.000000e+00> : vector<8x128xf32>
    %2 = tpu.matmul %0, %1, %cst {dimension_numbers = #tpu.dot_dimension_numbers<[1], [0], [0], [1], [0, 0, 1, 1], [], []>} : vector<8x128xf32>, vector<128x128xf32>, vector<8x128xf32> -> vector<8x128xf32>
    %c0_3 = arith.constant 0 : index
    %c0_4 = arith.constant 0 : index
    %3 = vector.load %arg3[%c0_3, %c0_4] : memref<8x128xf32, #tpu.memory_space<vmem>>, vector<8x128xf32>
    tpu.vector_store %arg3[%c0_3, %c0_4], %2 {strides = array<i32>} : memref<8x128xf32, #tpu.memory_space<vmem>>, vector<8x128xf32>,
    return
  }
  func.func @transform_0(%arg0: i32) -> (i32, i32) {
    %c0_i32 = arith.constant 0 : i32
    %c0_i32_0 = arith.constant 0 : i32
    return %arg0, %c0_i32 : i32, i32
  }
  func.func @transform_1(%arg0: i32) -> (i32, i32) {
    %c0_i32 = arith.constant 0 : i32
    %c0_i32_0 = arith.constant 0 : i32
    %c0_i32_1 = arith.constant 0 : i32
    return %c0_i32, %c0_i32_0 : i32, i32
  }
  func.func @transform_2(%arg0: i32) -> (i32, i32) {
    %c0_i32 = arith.constant 0 : i32
    %c0_i32_0 = arith.constant 0 : i32
    return %arg0, %c0_i32 : i32, i32
  }
}

module attributes {stable_mosaic.version = 11 : i64} {
  func.func @_ffn_resident_kernel(%arg0: i32, %arg1: memref<16x128xbf16, #tpu.memory_space<vmem>>, %arg2: memref<128x128xbf16, #tpu.memory_space<vmem>>, %arg3: memref<1x128xf32, #tpu.memory_space<vmem>>, %arg4: memref<128x128xbf16, #tpu.memory_space<vmem>>, %arg5: memref<1x128xf32, #tpu.memory_space<vmem>>, %arg6: memref<16x128xf32, #tpu.memory_space<vmem>>) attributes {dimension_semantics = [#tpu.dimension_semantics<parallel>], iteration_bounds = array<i64: 1>, scalar_prefetch = 0 : i64, scratch_operands = 0 : i64, tpu.core_type = #tpu.core_type<tc>, window_params = [{transform_indices = @transform_0, window_bounds = array<i64: 16, 128>}, {pipeline_mode = #tpu.pipeline_mode<synchronous>, transform_indices = @transform_1, window_bounds = array<i64: 128, 128>}, {pipeline_mode = #tpu.pipeline_mode<synchronous>, transform_indices = @transform_2, window_bounds = array<i64: 1, 128>}, {pipeline_mode = #tpu.pipeline_mode<synchronous>, transform_indices = @transform_3, window_bounds = array<i64: 128, 128>}, {pipeline_mode = #tpu.pipeline_mode<synchronous>, transform_indices = @transform_4, window_bounds = array<i64: 1, 128>}, {transform_indices = @transform_5, window_bounds = array<i64: 16, 128>}]} {
    %c0 = arith.constant 0 : index
    %c0_0 = arith.constant 0 : index
    %0 = vector.load %arg1[%c0, %c0_0] : memref<16x128xbf16, #tpu.memory_space<vmem>>, vector<16x128xbf16>
    %c0_1 = arith.constant 0 : index
    %c0_2 = arith.constant 0 : index
    %1 = vector.load %arg2[%c0_1, %c0_2] : memref<128x128xbf16, #tpu.memory_space<vmem>>, vector<128x128xbf16>
    %cst = arith.constant dense<0.000000e+00> : vector<16x128xf32>
    %2 = tpu.matmul %0, %1, %cst {dimension_numbers = #tpu.dot_dimension_numbers<[1], [0], [0], [1], [0, 0, 1, 1], [], []>} : vector<16x128xbf16>, vector<128x128xbf16>, vector<16x128xf32> -> vector<16x128xf32>
    %c0_3 = arith.constant 0 : index
    %c0_4 = arith.constant 0 : index
    %3 = vector.load %arg3[%c0_3, %c0_4] : memref<1x128xf32, #tpu.memory_space<vmem>>, vector<1x128xf32>
    %4 = vector.broadcast %3 : vector<1x128xf32> to vector<16x128xf32>
    %5 = arith.addf %2, %4 : vector<16x128xf32>
    %cst_5 = arith.constant 5.000000e-01 : f32
    %6 = vector.broadcast %cst_5 : f32 to vector<16x128xf32>
    %7 = arith.mulf %6, %5 : vector<16x128xf32>
    %cst_6 = arith.constant 0.707106769 : f32
    %8 = vector.broadcast %cst_6 : f32 to vector<16x128xf32>
    %9 = arith.mulf %5, %8 : vector<16x128xf32>
    %10 = math.erf %9 : vector<16x128xf32>
    %cst_7 = arith.constant 1.000000e+00 : f32
    %11 = vector.broadcast %cst_7 : f32 to vector<16x128xf32>
    %12 = arith.addf %11, %10 : vector<16x128xf32>
    %13 = arith.mulf %7, %12 : vector<16x128xf32>
    %14 = arith.truncf %13 : vector<16x128xf32> to vector<16x128xbf16>
    %c0_8 = arith.constant 0 : index
    %c0_9 = arith.constant 0 : index
    %15 = vector.load %arg4[%c0_8, %c0_9] : memref<128x128xbf16, #tpu.memory_space<vmem>>, vector<128x128xbf16>
    %cst_10 = arith.constant dense<0.000000e+00> : vector<16x128xf32>
    %16 = tpu.matmul %14, %15, %cst_10 {dimension_numbers = #tpu.dot_dimension_numbers<[1], [0], [0], [1], [0, 0, 1, 1], [], []>} : vector<16x128xbf16>, vector<128x128xbf16>, vector<16x128xf32> -> vector<16x128xf32>
    %c0_11 = arith.constant 0 : index
    %c0_12 = arith.constant 0 : index
    %17 = vector.load %arg5[%c0_11, %c0_12] : memref<1x128xf32, #tpu.memory_space<vmem>>, vector<1x128xf32>
    %18 = vector.broadcast %17 : vector<1x128xf32> to vector<16x128xf32>
    %19 = arith.addf %16, %18 : vector<16x128xf32>
    %c0_13 = arith.constant 0 : index
    %c0_14 = arith.constant 0 : index
    %20 = vector.load %arg6[%c0_13, %c0_14] : memref<16x128xf32, #tpu.memory_space<vmem>>, vector<16x128xf32>
    tpu.vector_store %arg6[%c0_13, %c0_14], %19 {strides = array<i32>} : memref<16x128xf32, #tpu.memory_space<vmem>>, vector<16x128xf32>,
    return
  }
  func.func @transform_0(%arg0: i32) -> (i32, i32) {
    %c0_i32 = arith.constant 0 : i32
    %c0_i32_0 = arith.constant 0 : i32
    return %arg0, %c0_i32 : i32, i32
  }
  func.func @transform_1(%arg0: i32) -> (i32, i32) {
    %c0_i32 = arith.constant 0 : i32
    %c0_i32_0 = arith.constant 0 : i32
    %c0_i32_1 = arith.constant 0 : i32
    return %c0_i32, %c0_i32_0 : i32, i32
  }
  func.func @transform_2(%arg0: i32) -> (i32, i32) {
    %c0_i32 = arith.constant 0 : i32
    %c0_i32_0 = arith.constant 0 : i32
    %c0_i32_1 = arith.constant 0 : i32
    return %c0_i32, %c0_i32_0 : i32, i32
  }
  func.func @transform_3(%arg0: i32) -> (i32, i32) {
    %c0_i32 = arith.constant 0 : i32
    %c0_i32_0 = arith.constant 0 : i32
    %c0_i32_1 = arith.constant 0 : i32
    return %c0_i32, %c0_i32_0 : i32, i32
  }
  func.func @transform_4(%arg0: i32) -> (i32, i32) {
    %c0_i32 = arith.constant 0 : i32
    %c0_i32_0 = arith.constant 0 : i32
    %c0_i32_1 = arith.constant 0 : i32
    return %c0_i32, %c0_i32_0 : i32, i32
  }
  func.func @transform_5(%arg0: i32) -> (i32, i32) {
    %c0_i32 = arith.constant 0 : i32
    %c0_i32_0 = arith.constant 0 : i32
    return %arg0, %c0_i32 : i32, i32
  }
}

</mosaic_0001>

<llo_original>
// kernel: tpu_custom_call.1
$region0: #{tpu_custom_call.1}
  #allocation0 [shape = 'u32[]', space=smem, size = 0x4, offset = 0x4, fixed_abs, tag = 'smem constant byte address 0x4 - core index']
  #allocation1 [shape = 'u32[144,128]{1,0:T(1,128)}', space=vmem, size = 0x12000, scoped, tag = 'internal scratch']
  %s0 = inlined_call_operand.hbm [shape: f32[16,128], index: 0, kind: input, shape index: {}]
  %s1 = inlined_call_operand.hbm [shape: f32[128,128], index: 1, kind: input, shape index: {}]
  %s2 = inlined_call_operand.hbm [shape: f32[16,128], index: 2, kind: output, shape index: {}]
  %s3 = sld [smem:[#allocation0]]
  $region49: #{tpu_custom_call.1} parent=0
    _
  %s5 = ssub.s32 1, %s3
  %s6 = scalar_select 0, %s5, %s3
  $region1: #{tpu_custom_call.1} parent=0
    #allocation2 [shape = 'u8[8192]{0}', space=vmem, size = 0x2000, scoped, tag = 'input window, operand 0']
    #allocation3 [shape = 's32[2]{0}', space=sflag, size = 0x8, scoped, tag = 'scoped memory for tpu_custom_call.1']
    #allocation4 [shape = 's32[2]{0}', space=sflag, size = 0x8, scoped, tag = 'scoped memory for tpu_custom_call.1']
    #allocation5 [shape = 'u8[65536]{0}', space=vmem, size = 0x10000, scoped, tag = 'input window, operand 1, single buffered']
    #allocation6 [shape = 's32[1]{0}', space=sflag, size = 0x4, scoped, tag = 'scoped memory for tpu_custom_call.1']
    #allocation7 [shape = 'u8[8192]{0}', space=vmem, size = 0x2000, scoped, tag = 'output window, operand 0']
    %7 = vsyncpa [#allocation3], 0
    %s8 = scalar_lea.sflag [#allocation3], 1
    %9 = vsyncpa %s8, 0
    %10 = vsyncpa [#allocation6], 0
    %11 = vsyncpa [#allocation4], 0
    %s12 = scalar_lea.sflag [#allocation4], 1
    %13 = vsyncpa %s12, 0
    loop: start=0, step=1, limit=4
    $region2: #{tpu_custom_call.1} parent=1 // loop_pre_header
      _
    $region3: #{tpu_custom_call.1} parent=1 // loop_header
      %s15 = sphi 0, %s19
      %p16 = scmp.ge.s32.totalorder %s15, 4
      %s25 = sphi 0, %s27
      %s28 = sphi 0, %s25
      %s29 = sphi 0, %s28
      %s45 = sphi 0, %s29
      %s49 = sphi 0, %s49
      %s51 = sphi 0, %s49
      %s52 = sphi 0, %s51
      %s66 = sphi 0, %s52
      %s72 = sphi 0, %s74
      %s75 = sphi 0, %s72
      %s76 = sphi 0, %s75
      %s92 = sphi 0, %s76
    $region4: #{tpu_custom_call.1} parent=1 // loop_header_branch
      %18 = sbr.rel (%p16) target = $region8
    $region5: #{tpu_custom_call.1} parent=1 // loop_body
      %s20 = ssub.s32 %s15, 1
      %s21 = ssub.s32 %s15, 2
      %s22 = sadd.s32 %s15, 1
      %s23 = ssub.s32 %s15, %s22
      %p24 = scmp.eq.s32.totalorder %s23, 0
      %s26 = sadd.s32 %s25, 1
      %s27 = scalar_select %p24, %s25, %s26
      %p30 = pneg %p24
      %p31 = scmp.eq.s32.totalorder %s15, 1
      %p32 = por %p30, %p31
      %p33 = scmp.ne.s32.totalorder %s25, %s28
      %p34 = scmp.eq.s32.totalorder %s15, 0
      %p35 = por %p33, %p34
      %p36 = scmp.ne.s32.totalorder %s25, %s28
      %p37 = scmp.eq.s32.totalorder %s20, 1
      %p38 = por %p36, %p37
      %p39 = scmp.ne.s32.totalorder %s28, %s29
      %p40 = scmp.eq.s32.totalorder %s20, 0
      %p41 = por %p39, %p40
      %p42 = scmp.ne.s32.totalorder %s28, %s29
      %p43 = scmp.eq.s32.totalorder %s21, 1
      %p44 = por %p42, %p43
      %p46 = scmp.ne.s32.totalorder %s29, %s45
      %p47 = scmp.eq.s32.totalorder %s21, 0
      %p48 = por %p46, %p47
      %s50 = sadd.s32 %s49, 1
      %p53 = scmp.eq.s32.totalorder %s15, 1
      %p54 = scmp.ne.s32.totalorder %s49, %s51
      %p55 = scmp.eq.s32.totalorder %s15, 0
      %p56 = por %p54, %p55
      %p57 = scmp.ne.s32.totalorder %s49, %s51
      %p58 = scmp.eq.s32.totalorder %s20, 1
      %p59 = por %p57, %p58
      %p60 = scmp.ne.s32.totalorder %s51, %s52
      %p61 = scmp.eq.s32.totalorder %s20, 0
      %p62 = por %p60, %p61
      %p63 = scmp.ne.s32.totalorder %s51, %s52
      %p64 = scmp.eq.s32.totalorder %s21, 1
      %p65 = por %p63, %p64
      %p67 = scmp.ne.s32.totalorder %s52, %s66
      %p68 = scmp.eq.s32.totalorder %s21, 0
      %p69 = por %p67, %p68
      %s70 = ssub.s32 %s15, %s22
      %p71 = scmp.eq.s32.totalorder %s70, 0
      %s73 = sadd.s32 %s72, 1
      %s74 = scalar_select %p71, %s72, %s73
      %p77 = pneg %p71
      %p78 = scmp.eq.s32.totalorder %s15, 1
      %p79 = por %p77, %p78
      %p80 = scmp.ne.s32.totalorder %s72, %s75
      %p81 = scmp.eq.s32.totalorder %s15, 0
      %p82 = por %p80, %p81
      %p83 = scmp.ne.s32.totalorder %s72, %s75
      %p84 = scmp.eq.s32.totalorder %s20, 1
      %p85 = por %p83, %p84
      %p86 = scmp.ne.s32.totalorder %s75, %s76
      %p87 = scmp.eq.s32.totalorder %s20, 0
      %p88 = por %p86, %p87
      %p89 = scmp.ne.s32.totalorder %s75, %s76
      %p90 = scmp.eq.s32.totalorder %s21, 1
      %p91 = por %p89, %p90
      %p93 = scmp.ne.s32.totalorder %s76, %s92
      %p94 = scmp.eq.s32.totalorder %s21, 0
      %p95 = por %p93, %p94
      %p96 = scmp.le.s32.totalorder 1, %s15
      %p97 = scmp.lt.s32.totalorder %s15, 3
      %p98 = pnand %p96, %p97
      %p99 = pneg %p98
      // Predicated region
      $region9: #{tpu_custom_call.1} parent=5 // pred_check
        _
      $region10: #{tpu_custom_call.1} parent=5 // pred_check_branch
        %101 = sbr.rel (%p98) target = $region12
      $region11: #{tpu_custom_call.1} parent=5 // pred_region
        %s102 = ssub.s32 %s15, 1
        // Predicated region
        $region13: #{tpu_custom_call.1} parent=11 // pred_check
          %p103 = pneg %p62
        $region14: #{tpu_custom_call.1} parent=11 // pred_check_branch
          %105 = sbr.rel (%p103) target = $region16
        $region15: #{tpu_custom_call.1} parent=11 // pred_region
          %s107 = ssub.s32 2048, 2048
          %108 = vsyncadd [#allocation6], %s107
          %s109 = sshll.u32 [#allocation5], 4
          %s110 = int_to_ptr.vmem [resolvable:$true] %s109
          %115 = dma.hbm_to_vmem [thread:$0]  %s1, 2048, %s110, [#allocation6], 128, 128, 8
        $region16: #{tpu_custom_call.1} parent=11 // pred_fallthru
          _
      $region12: #{tpu_custom_call.1} parent=5 // pred_fallthru
        _
      %p116 = scmp.lt.s32.totalorder %s15, 2
      // Predicated region
      $region17: #{tpu_custom_call.1} parent=5 // pred_check
        %p117 = pneg %p116
      $region18: #{tpu_custom_call.1} parent=5 // pred_check_branch
        %119 = sbr.rel (%p117) target = $region20
      $region19: #{tpu_custom_call.1} parent=5 // pred_region
        // Predicated region
        $region21: #{tpu_custom_call.1} parent=19 // pred_check
          %p120 = pneg %p35
        $region22: #{tpu_custom_call.1} parent=19 // pred_check_branch
          %122 = sbr.rel (%p120) target = $region24
        $region23: #{tpu_custom_call.1} parent=19 // pred_region
          %s123 = sand.u32 %s25, 1
          %s124 = scalar_lea.sflag [#allocation3], %s123
          %s125 = sand.u32 %s25, 1
          %s126 = smul.addr %s125, 8
          %s127 = scalar_lea.vmem [#allocation2], %s126
          %s129 = ssub.s32 128, 128
          %130 = vsyncadd %s124, %s129
          %s131 = smul.addr %s15, 128
          %s132 = scalar_lea.hbm %s0, %s131
          %s134 = sshll.u32 %s127, 4
          %s135 = int_to_ptr.vmem [resolvable:$true] %s134
          %137 = dma.hbm_to_vmem [thread:$0]  %s132, 128, %s135, %s124
        $region24: #{tpu_custom_call.1} parent=19 // pred_fallthru
          _
      $region20: #{tpu_custom_call.1} parent=5 // pred_fallthru
        _
      %p138 = scmp.le.s32.totalorder 1, %s15
      %p139 = scmp.lt.s32.totalorder %s15, 3
      %p140 = pnand %p138, %p139
      %p141 = pneg %p140
      // Predicated region
      $region25: #{tpu_custom_call.1} parent=5 // pred_check
        _
      $region26: #{tpu_custom_call.1} parent=5 // pred_check_branch
        %143 = sbr.rel (%p140) target = $region28
      $region27: #{tpu_custom_call.1} parent=5 // pred_region
        %s144 = ssub.s32 %s15, 1
        %s145 = sand.u32 %s28, 1
        %s146 = scalar_lea.sflag [#allocation3], %s145
        %s147 = sand.u32 %s28, 1
        %s148 = smul.addr %s147, 8
        %s149 = scalar_lea.vmem [#allocation2], %s148
        // Predicated region
        $region29: #{tpu_custom_call.1} parent=27 // pred_check
          %p150 = pneg %p41
        $region30: #{tpu_custom_call.1} parent=27 // pred_check_branch
          %152 = sbr.rel (%p150) target = $region32
        $region31: #{tpu_custom_call.1} parent=27 // pred_region
          %153 = dma.done %s146, 128
        $region32: #{tpu_custom_call.1} parent=27 // pred_fallthru
          _
        // Predicated region
        $region33: #{tpu_custom_call.1} parent=27 // pred_check
          %p154 = pneg %p62
        $region34: #{tpu_custom_call.1} parent=27 // pred_check_branch
          %156 = sbr.rel (%p154) target = $region36
        $region35: #{tpu_custom_call.1} parent=27 // pred_region
          %157 = dma.done [#allocation6], 2048
        $region36: #{tpu_custom_call.1} parent=27 // pred_fallthru
          _
        %s158 = sand.u32 %s28, 1
        %s159 = scalar_lea.sflag [#allocation3], %s158
        %s160 = sand.u32 %s28, 1
        %s161 = smul.addr %s160, 8
        %s162 = scalar_lea.vmem [#allocation2], %s161
        %p163 = pneg %p41
        %p164 = pneg %p38
        %p165 = pneg %p62
        %p166 = pneg %p59
        %p167 = pneg %p88
        %p168 = pneg %p85
        %s169 = sand.u32 %s75, 1
        %s170 = scalar_lea.sflag [#allocation4], %s169
        %s171 = sand.u32 %s75, 1
        %s172 = smul.addr %s171, 8
        %s173 = scalar_lea.vmem [#allocation7], %s172
        %v174 = vld [vmem:[%s149] sm:$0xff]
        %v175 = vld [vmem:[#allocation5] sm:$0xff]
        %v176 = vld [vmem:[#allocation5 + $0x8] sm:$0xff]
        %v177 = vld [vmem:[#allocation5 + $0x10] sm:$0xff]
        %v178 = vld [vmem:[#allocation5 + $0x18] sm:$0xff]
        %v179 = vld [vmem:[#allocation5 + $0x20] sm:$0xff]
        %v180 = vld [vmem:[#allocation5 + $0x28] sm:$0xff]
        %v181 = vld [vmem:[#allocation5 + $0x30] sm:$0xff]
        %v182 = vld [vmem:[#allocation5 + $0x38] sm:$0xff]
        %v183 = vld [vmem:[#allocation5 + $0x40] sm:$0xff]
        %v184 = vld [vmem:[#allocation5 + $0x48] sm:$0xff]
        %v185 = vld [vmem:[#allocation5 + $0x50] sm:$0xff]
        %v186 = vld [vmem:[#allocation5 + $0x58] sm:$0xff]
        %v187 = vld [vmem:[#allocation5 + $0x60] sm:$0xff]
        %v188 = vld [vmem:[#allocation5 + $0x68] sm:$0xff]
        %v189 = vld [vmem:[#allocation5 + $0x70] sm:$0xff]
        %v190 = vld [vmem:[#allocation5 + $0x78] sm:$0xff]
        %191 = vmatprep.subr.mxu0 0.0
        %192 = vmatpush1.msra.mxu0 %v175
        %193 = vmatprep.subr.mxu0 0.0
        %194 = vmatpush1.msra.mxu0 %v176
        %195 = vmatprep.subr.mxu0 0.0
        %196 = vmatpush1.msra.mxu0 %v177
        %197 = vmatprep.subr.mxu0 0.0
        %198 = vmatpush1.msra.mxu0 %v178
        %199 = vmatprep.subr.mxu0 0.0
        %200 = vmatpush1.msra.mxu0 %v179
        %201 = vmatprep.subr.mxu0 0.0
        %202 = vmatpush1.msra.mxu0 %v180
        %203 = vmatprep.subr.mxu0 0.0
        %204 = vmatpush1.msra.mxu0 %v181
        %205 = vmatprep.subr.mxu0 0.0
        %206 = vmatpush1.msra.mxu0 %v182
        %207 = vmatprep.subr.mxu0 0.0
        %208 = vmatpush1.msra.mxu0 %v183
        %209 = vmatprep.subr.mxu0 0.0
        %210 = vmatpush1.msra.mxu0 %v184
        %211 = vmatprep.subr.mxu0 0.0
        %212 = vmatpush1.msra.mxu0 %v185
        %213 = vmatprep.subr.mxu0 0.0
        %214 = vmatpush1.msra.mxu0 %v186
        %215 = vmatprep.subr.mxu0 0.0
        %216 = vmatpush1.msra.mxu0 %v187
        %217 = vmatprep.subr.mxu0 0.0
        %218 = vmatpush1.msra.mxu0 %v188
        %219 = vmatprep.subr.mxu0 0.0
        %220 = vmatpush1.msra.mxu0 %v189
        %221 = vmatprep.subr.mxu0 0.0
        %222 = vmatpush1.msra.mxu0 %v190
        %223 = vmatprep.subr.mxu0 0.0
        %224 = vmatpush1.msra.mxu0 0.0
        %225 = vmatprep.subr.mxu0 0.0
        %226 = vmatpush1.msra.mxu0 0.0
        %227 = vmatprep.subr.mxu0 0.0
        %228 = vmatpush1.msra.mxu0 0.0
        %229 = vmatprep.subr.mxu0 0.0
        %230 = vmatpush1.msra.mxu0 0.0
        %231 = vmatprep.subr.mxu0 0.0
        %232 = vmatpush1.msra.mxu0 0.0
        %233 = vmatprep.subr.mxu0 0.0
        %234 = vmatpush1.msra.mxu0 0.0
        %235 = vmatprep.subr.mxu0 0.0
        %236 = vmatpush1.msra.mxu0 0.0
        %237 = vmatprep.subr.mxu0 0.0
        %238 = vmatpush1.msra.mxu0 0.0
        %239 = vmatprep.subr.mxu0 0.0
        %240 = vmatpush1.msra.mxu0 0.0
        %241 = vmatprep.subr.mxu0 0.0
        %242 = vmatpush1.msra.mxu0 0.0
        %243 = vmatprep.subr.mxu0 0.0
        %244 = vmatpush1.msra.mxu0 0.0
        %245 = vmatprep.subr.mxu0 0.0
        %246 = vmatpush1.msra.mxu0 0.0
        %247 = vmatprep.subr.mxu0 0.0
        %248 = vmatpush1.msra.mxu0 0.0
        %249 = vmatprep.subr.mxu0 0.0
        %250 = vmatpush1.msra.mxu0 0.0
        %251 = vmatprep.subr.mxu0 0.0
        %252 = vmatpush1.msra.mxu0 0.0
        %253 = vmatprep.subr.mxu0 0.0
        %254 = vmatpush1.msra.mxu0 0.0
        %255 = vmatprep.mubr.f32.mxu0 0.0
        %256 = vmatmul.mubr.f32.gmra.mrb[0].mxu0 %v174
        %v257 = vpop.f32.mrb[0].mxu0
        %v258 = vadd.f32 0.0, %v257
        %v259 = vpop.f32.mrb[0].mxu0
        %260 = vdwg.mxu0
        %261 = vst [vmem:[%s173] sm:$0xff] %v258
        %s262 = sand.u32 %s75, 1
        %s263 = scalar_lea.sflag [#allocation4], %s262
        %s264 = sand.u32 %s75, 1
        %s265 = smul.addr %s264, 8
        %s266 = scalar_lea.vmem [#allocation7], %s265
        // Predicated region
        $region37: #{tpu_custom_call.1} parent=27 // pred_check
          %p267 = pneg %p85
        $region38: #{tpu_custom_call.1} parent=27 // pred_check_branch
          %269 = sbr.rel (%p267) target = $region40
        $region39: #{tpu_custom_call.1} parent=27 // pred_region
          %s271 = ssub.s32 128, 128
          %272 = vsyncadd %s263, %s271
          %s273 = smul.addr %s20, 128
          %s274 = scalar_lea.hbm %s2, %s273
          %s276 = sshll.u32 %s266, 4
          %s277 = int_to_ptr.vmem [resolvable:$true] %s276
          %279 = dma.vmem_to_hbm [thread:$0]  %s277, 128, %s274, %s263
        $region40: #{tpu_custom_call.1} parent=27 // pred_fallthru
          _
      $region28: #{tpu_custom_call.1} parent=5 // pred_fallthru
        _
      %p280 = scmp.le.s32.totalorder 2, %s15
      // Predicated region
      $region41: #{tpu_custom_call.1} parent=5 // pred_check
        %p281 = pneg %p280
      $region42: #{tpu_custom_call.1} parent=5 // pred_check_branch
        %283 = sbr.rel (%p281) target = $region44
      $region43: #{tpu_custom_call.1} parent=5 // pred_region
        %s284 = ssub.s32 %s15, 2
        // Predicated region
        $region45: #{tpu_custom_call.1} parent=43 // pred_check
          %p285 = pneg %p91
        $region46: #{tpu_custom_call.1} parent=43 // pred_check_branch
          %287 = sbr.rel (%p285) target = $region48
        $region47: #{tpu_custom_call.1} parent=43 // pred_region
          %s288 = sand.u32 %s76, 1
          %s289 = scalar_lea.sflag [#allocation4], %s288
          %s290 = sand.u32 %s76, 1
          %s291 = smul.addr %s290, 8
          %s292 = scalar_lea.vmem [#allocation7], %s291
          %293 = dma.done %s289, 128
        $region48: #{tpu_custom_call.1} parent=43 // pred_fallthru
          _
      $region44: #{tpu_custom_call.1} parent=5 // pred_fallthru
        _
    $region6: #{tpu_custom_call.1} parent=1 // loop_footer
      %s19 = sadd.s32 1, %s15
    $region7: #{tpu_custom_call.1} parent=1 // loop_footer_branch
      %14 = sbr.rel target = $region3
    $region8: #{tpu_custom_call.1} parent=1 // loop_exit
      _
    %294 = vsyncpa [#allocation3], 1
    %s295 = scalar_lea.sflag [#allocation3], 1
    %296 = vsyncpa %s295, 1
    %297 = vsyncpa [#allocation6], 1
    %298 = vsyncpa [#allocation4], 1
    %s299 = scalar_lea.sflag [#allocation4], 1
    %300 = vsyncpa %s299, 1

// kernel: tpu_custom_call.1
$region0: #{tpu_custom_call.1}
  #allocation0 [shape = 'u32[]', space=smem, size = 0x4, offset = 0x4, fixed_abs, tag = 'smem constant byte address 0x4 - core index']
  #allocation1 [shape = 'u32[144,128]{1,0:T(1,128)}', space=vmem, size = 0x12000, scoped, tag = 'internal scratch']
  %s0 = inlined_call_operand.hbm [shape: bf16[16,128], index: 0, kind: input, shape index: {}]
  %s1 = inlined_call_operand.hbm [shape: bf16[128,128], index: 1, kind: input, shape index: {}]
  %s2 = inlined_call_operand.vmem [shape: f32[1,128], index: 2, kind: input, shape index: {}]
  %s3 = inlined_call_operand.hbm [shape: bf16[128,128], index: 3, kind: input, shape index: {}]
  %s4 = inlined_call_operand.vmem [shape: f32[1,128], index: 4, kind: input, shape index: {}]
  %s5 = inlined_call_operand.hbm [shape: f32[16,128], index: 5, kind: output, shape index: {}]
  %s6 = sld [smem:[#allocation0]]
  $region42: #{tpu_custom_call.1} parent=0
    _
  %s8 = ssub.s32 1, %s6
  %s9 = scalar_select 0, %s8, %s6
  $region1: #{tpu_custom_call.1} parent=0
    #allocation2 [shape = 'u8[4096]{0}', space=vmem, size = 0x1000, scoped, tag = 'input window, operand 0, single buffered']
    #allocation3 [shape = 's32[1]{0}', space=sflag, size = 0x4, scoped, tag = 'scoped memory for tpu_custom_call.1']
    #allocation4 [shape = 's32[1]{0}', space=sflag, size = 0x4, scoped, tag = 'scoped memory for tpu_custom_call.1']
    #allocation5 [shape = 'u8[32768]{0}', space=vmem, size = 0x8000, scoped, tag = 'input window, operand 1, single buffered']
    #allocation6 [shape = 's32[1]{0}', space=sflag, size = 0x4, scoped, tag = 'scoped memory for tpu_custom_call.1']
    #allocation7 [shape = 'u8[32768]{0}', space=vmem, size = 0x8000, scoped, tag = 'input window, operand 3, single buffered']
    #allocation8 [shape = 'u8[8192]{0}', space=vmem, size = 0x2000, scoped, tag = 'output window, operand 0, single buffered']
    %10 = vsyncpa [#allocation3], 0
    %11 = vsyncpa [#allocation6], 0
    %12 = vsyncpa [#allocation4], 0
    // Predicated region
    $region2: #{tpu_custom_call.1} parent=1 // pred_check
      _
    $region3: #{tpu_custom_call.1} parent=1 // pred_check_branch
      %14 = sbr.rel (0) target = $region5
    $region4: #{tpu_custom_call.1} parent=1 // pred_region
      %s16 = ssub.s32 128, 128
      %17 = vsyncadd [#allocation3], %s16
      %s18 = sshll.u32 [#allocation2], 4
      %s19 = int_to_ptr.vmem [resolvable:$true] %s18
      %24 = dma.hbm_to_vmem [thread:$0]  %s0, 128, %s19, [#allocation3], 64, 64, 4
    $region5: #{tpu_custom_call.1} parent=1 // pred_fallthru
      _
    // Predicated region
    $region6: #{tpu_custom_call.1} parent=1 // pred_check
      _
    $region7: #{tpu_custom_call.1} parent=1 // pred_check_branch
      %26 = sbr.rel (0) target = $region9
    $region8: #{tpu_custom_call.1} parent=1 // pred_region
      %s28 = ssub.s32 1024, 1024
      %29 = vsyncadd [#allocation6], %s28
      %s30 = sshll.u32 [#allocation5], 4
      %s31 = int_to_ptr.vmem [resolvable:$true] %s30
      %36 = dma.hbm_to_vmem [thread:$0]  %s1, 1024, %s31, [#allocation6], 64, 64, 4
    $region9: #{tpu_custom_call.1} parent=1 // pred_fallthru
      _
    // Predicated region
    $region10: #{tpu_custom_call.1} parent=1 // pred_check
      _
    $region11: #{tpu_custom_call.1} parent=1 // pred_check_branch
      %38 = sbr.rel (0) target = $region13
    $region12: #{tpu_custom_call.1} parent=1 // pred_region
      _
    $region13: #{tpu_custom_call.1} parent=1 // pred_fallthru
      _
    // Predicated region
    $region14: #{tpu_custom_call.1} parent=1 // pred_check
      _
    $region15: #{tpu_custom_call.1} parent=1 // pred_check_branch
      %40 = sbr.rel (0) target = $region17
    $region16: #{tpu_custom_call.1} parent=1 // pred_region
      %s42 = ssub.s32 1024, 1024
      %43 = vsyncadd [#allocation6], %s42
      %s44 = sshll.u32 [#allocation7], 4
      %s45 = int_to_ptr.vmem [resolvable:$true] %s44
      %50 = dma.hbm_to_vmem [thread:$0]  %s3, 1024, %s45, [#allocation6], 64, 64, 4
    $region17: #{tpu_custom_call.1} parent=1 // pred_fallthru
      _
    // Predicated region
    $region18: #{tpu_custom_call.1} parent=1 // pred_check
      _
    $region19: #{tpu_custom_call.1} parent=1 // pred_check_branch
      %52 = sbr.rel (0) target = $region21
    $region20: #{tpu_custom_call.1} parent=1 // pred_region
      _
    $region21: #{tpu_custom_call.1} parent=1 // pred_fallthru
      _
    // Predicated region
    $region22: #{tpu_custom_call.1} parent=1 // pred_check
      _
    $region23: #{tpu_custom_call.1} parent=1 // pred_check_branch
      %54 = sbr.rel (0) target = $region25
    $region24: #{tpu_custom_call.1} parent=1 // pred_region
      %55 = dma.done [#allocation3], 128
    $region25: #{tpu_custom_call.1} parent=1 // pred_fallthru
      _
    // Predicated region
    $region26: #{tpu_custom_call.1} parent=1 // pred_check
      _
    $region27: #{tpu_custom_call.1} parent=1 // pred_check_branch
      %57 = sbr.rel (0) target = $region29
    $region28: #{tpu_custom_call.1} parent=1 // pred_region
      %58 = dma.done [#allocation6], 1024
    $region29: #{tpu_custom_call.1} parent=1 // pred_fallthru
      _
    // Predicated region
    $region30: #{tpu_custom_call.1} parent=1 // pred_check
      _
    $region31: #{tpu_custom_call.1} parent=1 // pred_check_branch
      %60 = sbr.rel (0) target = $region33
    $region32: #{tpu_custom_call.1} parent=1 // pred_region
      %61 = dma.done [#allocation6], 1024
    $region33: #{tpu_custom_call.1} parent=1 // pred_fallthru
      _
    %v63 = vld [vmem:[#allocation2] sm:$0xf]
    %v64 = vld [vmem:[#allocation2 + $0x4] sm:$0xf]
    %v65 = vld [vmem:[#allocation5] sm:$0xf]
    %v66 = vld [vmem:[#allocation5 + $0x4] sm:$0xf]
    %v67 = vld [vmem:[#allocation5 + $0x8] sm:$0xf]
    %v68 = vld [vmem:[#allocation5 + $0xc] sm:$0xf]
    %v69 = vld [vmem:[#allocation5 + $0x10] sm:$0xf]
    %v70 = vld [vmem:[#allocation5 + $0x14] sm:$0xf]
    %v71 = vld [vmem:[#allocation5 + $0x18] sm:$0xf]
    %v72 = vld [vmem:[#allocation5 + $0x1c] sm:$0xf]
    %v73 = vld [vmem:[#allocation5 + $0x20] sm:$0xf]
    %v74 = vld [vmem:[#allocation5 + $0x24] sm:$0xf]
    %v75 = vld [vmem:[#allocation5 + $0x28] sm:$0xf]
    %v76 = vld [vmem:[#allocation5 + $0x2c] sm:$0xf]
    %v77 = vld [vmem:[#allocation5 + $0x30] sm:$0xf]
    %v78 = vld [vmem:[#allocation5 + $0x34] sm:$0xf]
    %v79 = vld [vmem:[#allocation5 + $0x38] sm:$0xf]
    %v80 = vld [vmem:[#allocation5 + $0x3c] sm:$0xf]
    %v81 = vld [vmem:[%s2] sm:$0x1]
    %v83 = vlaneseq
    %v84 = vshrl.u32 %v83, 7
    %v85 = vsub.s32 0, %v84
    %v86 = vrot.slane %v81, %v85
    %v90 = vunpack.c.l.b16 %v63
    %v91 = vunpack.c.l.b16 %v64
    %v92 = vpack.c.b16 %v91, %v90
    %v110 = vunpack.c.l.b16 %v65
    %v111 = vunpack.c.l.b16 %v66
    %v112 = vunpack.c.l.b16 %v67
    %v113 = vunpack.c.l.b16 %v68
    %v114 = vunpack.c.l.b16 %v69
    %v115 = vunpack.c.l.b16 %v70
    %v116 = vunpack.c.l.b16 %v71
    %v117 = vunpack.c.l.b16 %v72
    %v118 = vunpack.c.l.b16 %v73
    %v119 = vunpack.c.l.b16 %v74
    %v120 = vunpack.c.l.b16 %v75
    %v121 = vunpack.c.l.b16 %v76
    %v122 = vunpack.c.l.b16 %v77
    %v123 = vunpack.c.l.b16 %v78
    %v124 = vunpack.c.l.b16 %v79
    %v125 = vunpack.c.l.b16 %v80
    %v126 = vpack.c.b16 %v111, %v110
    %v127 = vpack.c.b16 %v113, %v112
    %v128 = vpack.c.b16 %v115, %v114
    %v129 = vpack.c.b16 %v117, %v116
    %v130 = vpack.c.b16 %v119, %v118
    %v131 = vpack.c.b16 %v121, %v120
    %v132 = vpack.c.b16 %v123, %v122
    %v133 = vpack.c.b16 %v125, %v124
    %142 = vmatprep.subr.bf16.mxu0 0
    %143 = vmatpush1.bf16.msra.mxu0 %v126
    %144 = vmatprep.subr.bf16.mxu0 0
    %145 = vmatpush1.bf16.msra.mxu0 %v127
    %146 = vmatprep.subr.bf16.mxu0 0
    %147 = vmatpush1.bf16.msra.mxu0 %v128
    %148 = vmatprep.subr.bf16.mxu0 0
    %149 = vmatpush1.bf16.msra.mxu0 %v129
    %150 = vmatprep.subr.bf16.mxu0 0
    %151 = vmatpush1.bf16.msra.mxu0 %v130
    %152 = vmatprep.subr.bf16.mxu0 0
    %153 = vmatpush1.bf16.msra.mxu0 %v131
    %154 = vmatprep.subr.bf16.mxu0 0
    %155 = vmatpush1.bf16.msra.mxu0 %v132
    %156 = vmatprep.subr.bf16.mxu0 0
    %157 = vmatpush1.bf16.msra.mxu0 %v133
    %158 = vmatprep.subr.bf16.mxu0 0
    %159 = vmatpush1.bf16.msra.mxu0 0
    %160 = vmatprep.subr.bf16.mxu0 0
    %161 = vmatpush1.bf16.msra.mxu0 0
    %162 = vmatprep.subr.bf16.mxu0 0
    %163 = vmatpush1.bf16.msra.mxu0 0
    %164 = vmatprep.subr.bf16.mxu0 0
    %165 = vmatpush1.bf16.msra.mxu0 0
    %166 = vmatprep.subr.bf16.mxu0 0
    %167 = vmatpush1.bf16.msra.mxu0 0
    %168 = vmatprep.subr.bf16.mxu0 0
    %169 = vmatpush1.bf16.msra.mxu0 0
    %170 = vmatprep.subr.bf16.mxu0 0
    %171 = vmatpush1.bf16.msra.mxu0 0
    %172 = vmatprep.subr.bf16.mxu0 0
    %173 = vmatpush1.bf16.msra.mxu0 0
    %174 = vmatprep.mubr.bf16.mxu0 0
    %175 = vmatmul.mubr.bf16.gmra.mrb[0].mxu0 %v92
    %v176 = vpop.f32.mrb[0].mxu0
    %v177 = vadd.f32 %v86, %v176
    %v178 = vpop.f32.mrb[0].mxu0
    %v179 = vpop.f32.mrb[0].mxu0
    %v180 = vadd.f32 %v86, %v179
    %v181 = vpop.f32.mrb[0].mxu0
    %182 = vdwg.mxu0
    %v183 = vmul.f32 %v177, 0.5
    %v184 = vmul.f32 %v180, 0.5
    %v185 = vmul.f32 %v177, 0.70710677
    %v186 = vmul.f32 %v180, 0.70710677
    %v187 = verf.f32.pop %v185
    %v188 = verf.f32.pop %v186
    %v189 = vadd.f32 %v187, 1.0
    %v190 = vadd.f32 %v188, 1.0
    %v191 = vmul.f32 %v183, %v189
    %v192 = vmul.f32 %v184, %v190
    %v193 = vpack.c.bf16 %v192, %v191
    %v194 = vld [vmem:[#allocation7] sm:$0xf]
    %v195 = vld [vmem:[#allocation7 + $0x4] sm:$0xf]
    %v196 = vld [vmem:[#allocation7 + $0x8] sm:$0xf]
    %v197 = vld [vmem:[#allocation7 + $0xc] sm:$0xf]
    %v198 = vld [vmem:[#allocation7 + $0x10] sm:$0xf]
    %v199 = vld [vmem:[#allocation7 + $0x14] sm:$0xf]
    %v200 = vld [vmem:[#allocation7 + $0x18] sm:$0xf]
    %v201 = vld [vmem:[#allocation7 + $0x1c] sm:$0xf]
    %v202 = vld [vmem:[#allocation7 + $0x20] sm:$0xf]
    %v203 = vld [vmem:[#allocation7 + $0x24] sm:$0xf]
    %v204 = vld [vmem:[#allocation7 + $0x28] sm:$0xf]
    %v205 = vld [vmem:[#allocation7 + $0x2c] sm:$0xf]
    %v206 = vld [vmem:[#allocation7 + $0x30] sm:$0xf]
    %v207 = vld [vmem:[#allocation7 + $0x34] sm:$0xf]
    %v208 = vld [vmem:[#allocation7 + $0x38] sm:$0xf]
    %v209 = vld [vmem:[#allocation7 + $0x3c] sm:$0xf]
    %v210 = vld [vmem:[%s4] sm:$0x1]
    %v212 = vlaneseq
    %v213 = vshrl.u32 %v212, 7
    %v214 = vsub.s32 0, %v213
    %v215 = vrot.slane %v210, %v214
    %v233 = vunpack.c.l.b16 %v194
    %v234 = vunpack.c.l.b16 %v195
    %v235 = vunpack.c.l.b16 %v196
    %v236 = vunpack.c.l.b16 %v197
    %v237 = vunpack.c.l.b16 %v198
    %v238 = vunpack.c.l.b16 %v199
    %v239 = vunpack.c.l.b16 %v200
    %v240 = vunpack.c.l.b16 %v201
    %v241 = vunpack.c.l.b16 %v202
    %v242 = vunpack.c.l.b16 %v203
    %v243 = vunpack.c.l.b16 %v204
    %v244 = vunpack.c.l.b16 %v205
    %v245 = vunpack.c.l.b16 %v206
    %v246 = vunpack.c.l.b16 %v207
    %v247 = vunpack.c.l.b16 %v208
    %v248 = vunpack.c.l.b16 %v209
    %v249 = vpack.c.b16 %v234, %v233
    %v250 = vpack.c.b16 %v236, %v235
    %v251 = vpack.c.b16 %v238, %v237
    %v252 = vpack.c.b16 %v240, %v239
    %v253 = vpack.c.b16 %v242, %v241
    %v254 = vpack.c.b16 %v244, %v243
    %v255 = vpack.c.b16 %v246, %v245
    %v256 = vpack.c.b16 %v248, %v247
    %265 = vmatprep.subr.bf16.mxu0 0
    %266 = vmatpush1.bf16.msra.mxu0 %v249
    %267 = vmatprep.subr.bf16.mxu0 0
    %268 = vmatpush1.bf16.msra.mxu0 %v250
    %269 = vmatprep.subr.bf16.mxu0 0
    %270 = vmatpush1.bf16.msra.mxu0 %v251
    %271 = vmatprep.subr.bf16.mxu0 0
    %272 = vmatpush1.bf16.msra.mxu0 %v252
    %273 = vmatprep.subr.bf16.mxu0 0
    %274 = vmatpush1.bf16.msra.mxu0 %v253
    %275 = vmatprep.subr.bf16.mxu0 0
    %276 = vmatpush1.bf16.msra.mxu0 %v254
    %277 = vmatprep.subr.bf16.mxu0 0
    %278 = vmatpush1.bf16.msra.mxu0 %v255
    %279 = vmatprep.subr.bf16.mxu0 0
    %280 = vmatpush1.bf16.msra.mxu0 %v256
    %281 = vmatprep.subr.bf16.mxu0 0
    %282 = vmatpush1.bf16.msra.mxu0 0
    %283 = vmatprep.subr.bf16.mxu0 0
    %284 = vmatpush1.bf16.msra.mxu0 0
    %285 = vmatprep.subr.bf16.mxu0 0
    %286 = vmatpush1.bf16.msra.mxu0 0
    %287 = vmatprep.subr.bf16.mxu0 0
    %288 = vmatpush1.bf16.msra.mxu0 0
    %289 = vmatprep.subr.bf16.mxu0 0
    %290 = vmatpush1.bf16.msra.mxu0 0
    %291 = vmatprep.subr.bf16.mxu0 0
    %292 = vmatpush1.bf16.msra.mxu0 0
    %293 = vmatprep.subr.bf16.mxu0 0
    %294 = vmatpush1.bf16.msra.mxu0 0
    %295 = vmatprep.subr.bf16.mxu0 0
    %296 = vmatpush1.bf16.msra.mxu0 0
    %297 = vmatprep.mubr.bf16.mxu0 0
    %298 = vmatmul.mubr.bf16.gmra.mrb[0].mxu0 %v193
    %v299 = vpop.f32.mrb[0].mxu0
    %v300 = vadd.f32 %v215, %v299
    %v301 = vpop.f32.mrb[0].mxu0
    %v302 = vpop.f32.mrb[0].mxu0
    %v303 = vadd.f32 %v215, %v302
    %v304 = vpop.f32.mrb[0].mxu0
    %305 = vdwg.mxu0
    %306 = vst [vmem:[#allocation8] sm:$0xff] %v300
    %307 = vst [vmem:[#allocation8 + $0x8] sm:$0xff] %v303
    // Predicated region
    $region34: #{tpu_custom_call.1} parent=1 // pred_check
      _
    $region35: #{tpu_custom_call.1} parent=1 // pred_check_branch
      %309 = sbr.rel (0) target = $region37
    $region36: #{tpu_custom_call.1} parent=1 // pred_region
      %s311 = ssub.s32 256, 256
      %312 = vsyncadd [#allocation4], %s311
      %s313 = sshll.u32 [#allocation8], 4
      %s314 = int_to_ptr.vmem [resolvable:$true] %s313
      %319 = dma.vmem_to_hbm [thread:$0]  %s314, 256, %s5, [#allocation4], 128, 128, 8
    $region37: #{tpu_custom_call.1} parent=1 // pred_fallthru
      _
    // Predicated region
    $region38: #{tpu_custom_call.1} parent=1 // pred_check
      _
    $region39: #{tpu_custom_call.1} parent=1 // pred_check_branch
      %321 = sbr.rel (0) target = $region41
    $region40: #{tpu_custom_call.1} parent=1 // pred_region
      %322 = dma.done [#allocation4], 256
    $region41: #{tpu_custom_call.1} parent=1 // pred_fallthru
      _
    %323 = vsyncpa [#allocation3], 1
    %324 = vsyncpa [#allocation6], 1
    %325 = vsyncpa [#allocation4], 1

</llo_original>
